<compile_context>
chip_gen: v7x
topology: tpu7x:2x2x1
jax: 0.10.0
libtpu: 0.0.40
codegen_flags: <defaults>
</compile_context>

<pallas_src>
import jax
import jax.numpy as jnp
from jax.experimental import pallas as pl
from jax.experimental.pallas import tpu as pltpu


def _round_up(a, b):
    return (a + b - 1) // b * b


def _cdiv(a, b):
    return (a + b - 1) // b


def _num_tensorcores():
    """2 on v7x (dual TensorCore), 1 on v5e/v6e. Defensive: defaults to 1."""
    try:
        kind = jax.devices()[0].device_kind.lower()
    except Exception:
        return 1
    return 2 if "v7" in kind else 1


def _fc_kernel(x_ref, w1_ref, b1_ref, wloc_ref, bloc_ref, o_ref):
    # One (br, D) batch tile per grid step; all parameters fully resident in VMEM.
    x = x_ref[...]                                            # f32 (br, D)

    # Residual branch: relu(fc_1(x)). f32 matmul — MXU time is hidden under DMA.
    h = jnp.dot(x, w1_ref[...], preferred_element_type=jnp.float32) + b1_ref[...]
    h = jnp.maximum(h, 0.0)

    # Residual add, then fc_loc with BatchNorm pre-folded into wloc/bloc.
    y = x + h
    o_ref[...] = (jnp.dot(y, wloc_ref[...], preferred_element_type=jnp.float32)
                  + bloc_ref[...]).astype(o_ref.dtype)


def _fold_bn(params, eps):
    """Fold eval-mode BatchNorm1d into fc_loc (all f32)."""
    D = params["w_loc"].shape[0]
    scale = params["gamma"] * jax.lax.rsqrt(params["var"] + eps)      # (1, D)
    shift = params["beta"] - params["mean"] * scale                   # (1, D)
    w_loc_f = params["w_loc"] * scale.reshape(D, 1)                   # (D, L)
    b_loc_f = params["b_loc"] + shift @ params["w_loc"]               # (1, L)
    return (params["w1"].astype(jnp.float32),
            params["b1"].astype(jnp.float32).reshape(1, D),
            w_loc_f.astype(jnp.float32),
            b_loc_f.astype(jnp.float32))


def fully_connected(x, params, *, eps=1e-5, block_rows=2048, out_dtype=None):
    """x: (N, D) float32 -> (N, total_loc_num) out_dtype (default: x.dtype)."""
    N, D = x.shape
    L = params["w_loc"].shape[1]
    out_dtype = x.dtype if out_dtype is None else out_dtype

    w1, b1, w_loc, b_loc = _fold_bn(params, eps)

    # Batch tile: multiple of 8, no larger than needed to cover N.
    n8 = _round_up(N, 8)
    br = min(_round_up(block_rows, 8), n8)

    # v7x only: make the step count even (>= 2) so both TensorCores get equal work.
    if _num_tensorcores() > 1 and n8 >= 16:
        steps = max(2, _round_up(_cdiv(n8, br), 2))
        br = min(br, _round_up(_cdiv(n8, steps), 8))

    grid = (_cdiv(N, br),)

    def full2(shape):
        return pl.BlockSpec(shape, lambda i: (0, 0))

    return pl.pallas_call(
        _fc_kernel,
        out_shape=jax.ShapeDtypeStruct((N, L), out_dtype),
        grid_spec=pltpu.PrefetchScalarGridSpec(
            num_scalar_prefetch=0,
            grid=grid,
            in_specs=[
                pl.BlockSpec((br, D), lambda i: (i, 0)),  # x batch tile, f32
                full2((D, D)),   # fc_1 weight (in, out)
                full2((1, D)),   # fc_1 bias
                full2((D, L)),   # fc_loc weight with BN folded
                full2((1, L)),   # fc_loc bias with BN folded
            ],
            out_specs=pl.BlockSpec((br, L), lambda i: (i, 0)),
        ),
        compiler_params=pltpu.CompilerParams(dimension_semantics=("parallel",)),
    )(x, w1, b1, w_loc, b_loc)


def _reference_f32(x, p, eps=1e-5):
    """Pure-f32 eval-mode module semantics (ground truth)."""
    h = jnp.maximum(x @ p["w1"] + p["b1"], 0.0)
    y = x + h
    y = (y - p["mean"]) * jax.lax.rsqrt(p["var"] + eps) * p["gamma"] + p["beta"]
    return y @ p["w_loc"] + p["b_loc"]


if __name__ == "__main__":
    # Small shapes consistent with the module: d_input=32, total_loc_num=128.
    D, L = 32, 128

    key = jax.random.PRNGKey(0)
    kx, k1, k2, k3, k4, k5, k6, k7, k8 = jax.random.split(key, 9)

    params = {
        # nn.Linear(fc_dim, fc_dim): weight (D, D), bias (D,) -> stored transposed
        "w1": jax.random.normal(k1, (D, D), dtype=jnp.float32) * 0.1,
        "b1": jax.random.normal(k2, (1, D), dtype=jnp.float32) * 0.1,
        # nn.BatchNorm1d(fc_dim) running stats / affine (non-trivial to test the fold)
        "gamma": 1.0 + 0.1 * jax.random.normal(k5, (1, D), dtype=jnp.float32),
        "beta": 0.1 * jax.random.normal(k6, (1, D), dtype=jnp.float32),
        "mean": 0.1 * jax.random.normal(k7, (1, D), dtype=jnp.float32),
        "var": 0.5 + jnp.abs(jax.random.normal(k8, (1, D), dtype=jnp.float32)),
        # nn.Linear(fc_dim, total_loc_num): weight (L, D), bias (L,) -> stored transposed
        "w_loc": jax.random.normal(k3, (D, L), dtype=jnp.float32) * 0.1,
        "b_loc": jax.random.normal(k4, (1, L), dtype=jnp.float32) * 0.1,
    }

    # Case 1: N=30 (not a multiple of 8) -> single masked partial block (no host pad).
    N = 30
    x = jax.random.normal(kx, (N, D), dtype=jnp.float32)
    out = jax.block_until_ready(fully_connected(x, params))
    assert out.shape == (N, L) and out.dtype == jnp.float32
    ref = _reference_f32(x, params)
    assert jnp.allclose(out, ref, atol=2e-2, rtol=2e-2), "mismatch vs f32 reference (N=30)"

    # Case 2: multi-step grid with a partial trailing block (exercises masking path).
    N2 = 300
    x2 = jax.random.normal(kx, (N2, D), dtype=jnp.float32)
    out2 = jax.block_until_ready(fully_connected(x2, params, block_rows=128))
    assert out2.shape == (N2, L)
    ref2 = _reference_f32(x2, params)
    assert jnp.allclose(out2, ref2, atol=2e-2, rtol=2e-2), "mismatch vs f32 reference (N=300)"

    print("KERNEL_OK")
</pallas_src>

<mosaic_0001>
module attributes {stable_mosaic.version = 11 : i64} {
  func.func @_fc_kernel(%arg0: i32, %arg1: memref<32x32xf32, #tpu.memory_space<vmem>>, %arg2: memref<32x32xf32, #tpu.memory_space<vmem>>, %arg3: memref<1x32xf32, #tpu.memory_space<vmem>>, %arg4: memref<32x128xf32, #tpu.memory_space<vmem>>, %arg5: memref<1x128xf32, #tpu.memory_space<vmem>>, %arg6: memref<32x128xf32, #tpu.memory_space<vmem>>) attributes {dimension_semantics = [#tpu.dimension_semantics<parallel>], iteration_bounds = array<i64: 1>, scalar_prefetch = 0 : i64, scratch_operands = 0 : i64, tpu.core_type = #tpu.core_type<tc>, window_params = [{transform_indices = @transform_0, window_bounds = array<i64: 32, 32>}, {pipeline_mode = #tpu.pipeline_mode<synchronous>, transform_indices = @transform_1, window_bounds = array<i64: 32, 32>}, {pipeline_mode = #tpu.pipeline_mode<synchronous>, transform_indices = @transform_2, window_bounds = array<i64: 1, 32>}, {pipeline_mode = #tpu.pipeline_mode<synchronous>, transform_indices = @transform_3, window_bounds = array<i64: 32, 128>}, {pipeline_mode = #tpu.pipeline_mode<synchronous>, transform_indices = @transform_4, window_bounds = array<i64: 1, 128>}, {transform_indices = @transform_5, window_bounds = array<i64: 32, 128>}]} {
    %c0 = arith.constant 0 : index
    %c0_0 = arith.constant 0 : index
    %0 = vector.load %arg1[%c0, %c0_0] : memref<32x32xf32, #tpu.memory_space<vmem>>, vector<32x32xf32>
    %c0_1 = arith.constant 0 : index
    %c0_2 = arith.constant 0 : index
    %1 = vector.load %arg2[%c0_1, %c0_2] : memref<32x32xf32, #tpu.memory_space<vmem>>, vector<32x32xf32>
    %cst = arith.constant dense<0.000000e+00> : vector<32x32xf32>
    %2 = tpu.matmul %0, %1, %cst {dimension_numbers = #tpu.dot_dimension_numbers<[1], [0], [0], [1], [0, 0, 1, 1], [], []>} : vector<32x32xf32>, vector<32x32xf32>, vector<32x32xf32> -> vector<32x32xf32>
    %c0_3 = arith.constant 0 : index
    %c0_4 = arith.constant 0 : index
    %3 = vector.load %arg3[%c0_3, %c0_4] : memref<1x32xf32, #tpu.memory_space<vmem>>, vector<1x32xf32>
    %4 = vector.broadcast %3 : vector<1x32xf32> to vector<32x32xf32>
    %5 = arith.addf %2, %4 : vector<32x32xf32>
    %cst_5 = arith.constant 0.000000e+00 : f32
    %6 = vector.broadcast %cst_5 : f32 to vector<32x32xf32>
    %7 = arith.maximumf %5, %6 : vector<32x32xf32>
    %8 = arith.addf %0, %7 : vector<32x32xf32>
    %c0_6 = arith.constant 0 : index
    %c0_7 = arith.constant 0 : index
    %9 = vector.load %arg4[%c0_6, %c0_7] : memref<32x128xf32, #tpu.memory_space<vmem>>, vector<32x128xf32>
    %cst_8 = arith.constant dense<0.000000e+00> : vector<32x128xf32>
    %10 = tpu.matmul %8, %9, %cst_8 {dimension_numbers = #tpu.dot_dimension_numbers<[1], [0], [0], [1], [0, 0, 1, 1], [], []>} : vector<32x32xf32>, vector<32x128xf32>, vector<32x128xf32> -> vector<32x128xf32>
    %c0_9 = arith.constant 0 : index
    %c0_10 = arith.constant 0 : index
    %11 = vector.load %arg5[%c0_9, %c0_10] : memref<1x128xf32, #tpu.memory_space<vmem>>, vector<1x128xf32>
    %12 = vector.broadcast %11 : vector<1x128xf32> to vector<32x128xf32>
    %13 = arith.addf %10, %12 : vector<32x128xf32>
    %c0_11 = arith.constant 0 : index
    %c0_12 = arith.constant 0 : index
    %14 = vector.load %arg6[%c0_11, %c0_12] : memref<32x128xf32, #tpu.memory_space<vmem>>, vector<32x128xf32>
    tpu.vector_store %arg6[%c0_11, %c0_12], %13 {strides = array<i32>} : memref<32x128xf32, #tpu.memory_space<vmem>>, vector<32x128xf32>,
    return
  }
  func.func @transform_0(%arg0: i32) -> (i32, i32) {
    %c0_i32 = arith.constant 0 : i32
    %c0_i32_0 = arith.constant 0 : i32
    return %arg0, %c0_i32 : i32, i32
  }
  func.func @transform_1(%arg0: i32) -> (i32, i32) {
    %c0_i32 = arith.constant 0 : i32
    %c0_i32_0 = arith.constant 0 : i32
    %c0_i32_1 = arith.constant 0 : i32
    return %c0_i32, %c0_i32_0 : i32, i32
  }
  func.func @transform_2(%arg0: i32) -> (i32, i32) {
    %c0_i32 = arith.constant 0 : i32
    %c0_i32_0 = arith.constant 0 : i32
    %c0_i32_1 = arith.constant 0 : i32
    return %c0_i32, %c0_i32_0 : i32, i32
  }
  func.func @transform_3(%arg0: i32) -> (i32, i32) {
    %c0_i32 = arith.constant 0 : i32
    %c0_i32_0 = arith.constant 0 : i32
    %c0_i32_1 = arith.constant 0 : i32
    return %c0_i32, %c0_i32_0 : i32, i32
  }
  func.func @transform_4(%arg0: i32) -> (i32, i32) {
    %c0_i32 = arith.constant 0 : i32
    %c0_i32_0 = arith.constant 0 : i32
    %c0_i32_1 = arith.constant 0 : i32
    return %c0_i32, %c0_i32_0 : i32, i32
  }
  func.func @transform_5(%arg0: i32) -> (i32, i32) {
    %c0_i32 = arith.constant 0 : i32
    %c0_i32_0 = arith.constant 0 : i32
    return %arg0, %c0_i32 : i32, i32
  }
}

</mosaic_0001>

<llo_original>
// kernel: tpu_custom_call.1
$region0: #{tpu_custom_call.1}
  #allocation0 [shape = 'u32[]', space=smem, size = 0x4, offset = 0x4, fixed_abs, tag = 'smem constant byte address 0x4 - core index']
  #allocation1 [shape = 'u32[144,128]{1,0:T(1,128)}', space=vmem, size = 0x12000, scoped, tag = 'internal scratch']
  %s0 = inlined_call_operand.hbm [shape: f32[30,32], index: 0, kind: input, shape index: {}]
  %s1 = inlined_call_operand.hbm [shape: f32[32,32], index: 1, kind: input, shape index: {}]
  %s2 = inlined_call_operand.vmem [shape: f32[1,32], index: 2, kind: input, shape index: {}]
  %s3 = inlined_call_operand.hbm [shape: f32[32,128], index: 3, kind: input, shape index: {}]
  %s4 = inlined_call_operand.vmem [shape: f32[1,128], index: 4, kind: input, shape index: {}]
  %s5 = inlined_call_operand.hbm [shape: f32[30,128], index: 5, kind: output, shape index: {}]
  %s6 = sld [smem:[#allocation0]]
  $region42: #{tpu_custom_call.1} parent=0
    _
  %s8 = ssub.s32 1, %s6
  %s9 = scalar_select 0, %s8, %s6
  $region1: #{tpu_custom_call.1} parent=0
    #allocation2 [shape = 'u8[16384]{0}', space=vmem, size = 0x4000, scoped, tag = 'input window, operand 0, single buffered']
    #allocation3 [shape = 's32[1]{0}', space=sflag, size = 0x4, scoped, tag = 'scoped memory for tpu_custom_call.1']
    #allocation4 [shape = 's32[1]{0}', space=sflag, size = 0x4, scoped, tag = 'scoped memory for tpu_custom_call.1']
    #allocation5 [shape = 'u8[16384]{0}', space=vmem, size = 0x4000, scoped, tag = 'input window, operand 1, single buffered']
    #allocation6 [shape = 's32[1]{0}', space=sflag, size = 0x4, scoped, tag = 'scoped memory for tpu_custom_call.1']
    #allocation7 [shape = 'u8[16384]{0}', space=vmem, size = 0x4000, scoped, tag = 'input window, operand 3, single buffered']
    #allocation8 [shape = 'u8[16384]{0}', space=vmem, size = 0x4000, scoped, tag = 'output window, operand 0, single buffered']
    %10 = vsyncpa [#allocation3], 0
    %11 = vsyncpa [#allocation6], 0
    %12 = vsyncpa [#allocation4], 0
    // Predicated region
    $region2: #{tpu_custom_call.1} parent=1 // pred_check
      _
    $region3: #{tpu_custom_call.1} parent=1 // pred_check_branch
      %14 = sbr.rel (0) target = $region5
    $region4: #{tpu_custom_call.1} parent=1 // pred_region
      %s16 = ssub.s32 512, 512
      %17 = vsyncadd [#allocation3], %s16
      %s18 = sshll.u32 [#allocation2], 4
      %s19 = int_to_ptr.vmem [resolvable:$true] %s18
      %24 = dma.hbm_to_vmem [thread:$0]  %s0, 512, %s19, [#allocation3], 128, 128, 8
    $region5: #{tpu_custom_call.1} parent=1 // pred_fallthru
      _
    // Predicated region
    $region6: #{tpu_custom_call.1} parent=1 // pred_check
      _
    $region7: #{tpu_custom_call.1} parent=1 // pred_check_branch
      %26 = sbr.rel (0) target = $region9
    $region8: #{tpu_custom_call.1} parent=1 // pred_region
      %s28 = ssub.s32 512, 512
      %29 = vsyncadd [#allocation6], %s28
      %s30 = sshll.u32 [#allocation5], 4
      %s31 = int_to_ptr.vmem [resolvable:$true] %s30
      %36 = dma.hbm_to_vmem [thread:$0]  %s1, 512, %s31, [#allocation6], 128, 128, 8
    $region9: #{tpu_custom_call.1} parent=1 // pred_fallthru
      _
    // Predicated region
    $region10: #{tpu_custom_call.1} parent=1 // pred_check
      _
    $region11: #{tpu_custom_call.1} parent=1 // pred_check_branch
      %38 = sbr.rel (0) target = $region13
    $region12: #{tpu_custom_call.1} parent=1 // pred_region
      _
    $region13: #{tpu_custom_call.1} parent=1 // pred_fallthru
      _
    // Predicated region
    $region14: #{tpu_custom_call.1} parent=1 // pred_check
      _
    $region15: #{tpu_custom_call.1} parent=1 // pred_check_branch
      %40 = sbr.rel (0) target = $region17
    $region16: #{tpu_custom_call.1} parent=1 // pred_region
      %s42 = ssub.s32 512, 512
      %43 = vsyncadd [#allocation6], %s42
      %s44 = sshll.u32 [#allocation7], 4
      %s45 = int_to_ptr.vmem [resolvable:$true] %s44
      %50 = dma.hbm_to_vmem [thread:$0]  %s3, 512, %s45, [#allocation6], 128, 128, 8
    $region17: #{tpu_custom_call.1} parent=1 // pred_fallthru
      _
    // Predicated region
    $region18: #{tpu_custom_call.1} parent=1 // pred_check
      _
    $region19: #{tpu_custom_call.1} parent=1 // pred_check_branch
      %52 = sbr.rel (0) target = $region21
    $region20: #{tpu_custom_call.1} parent=1 // pred_region
      _
    $region21: #{tpu_custom_call.1} parent=1 // pred_fallthru
      _
    // Predicated region
    $region22: #{tpu_custom_call.1} parent=1 // pred_check
      _
    $region23: #{tpu_custom_call.1} parent=1 // pred_check_branch
      %54 = sbr.rel (0) target = $region25
    $region24: #{tpu_custom_call.1} parent=1 // pred_region
      %55 = dma.done [#allocation3], 512
    $region25: #{tpu_custom_call.1} parent=1 // pred_fallthru
      _
    // Predicated region
    $region26: #{tpu_custom_call.1} parent=1 // pred_check
      _
    $region27: #{tpu_custom_call.1} parent=1 // pred_check_branch
      %57 = sbr.rel (0) target = $region29
    $region28: #{tpu_custom_call.1} parent=1 // pred_region
      %58 = dma.done [#allocation6], 512
    $region29: #{tpu_custom_call.1} parent=1 // pred_fallthru
      _
    // Predicated region
    $region30: #{tpu_custom_call.1} parent=1 // pred_check
      _
    $region31: #{tpu_custom_call.1} parent=1 // pred_check_branch
      %60 = sbr.rel (0) target = $region33
    $region32: #{tpu_custom_call.1} parent=1 // pred_region
      %61 = dma.done [#allocation6], 512
    $region33: #{tpu_custom_call.1} parent=1 // pred_fallthru
      _
    %v62 = vld [vmem:[#allocation2] sm:$0xff]
    %v63 = vld [vmem:[#allocation2 + $0x8] sm:$0xff]
    %v64 = vld [vmem:[#allocation2 + $0x10] sm:$0xff]
    %v65 = vld [vmem:[#allocation2 + $0x18] sm:$0xff]
    %v66 = vld [vmem:[#allocation5] sm:$0xff]
    %v67 = vld [vmem:[#allocation5 + $0x8] sm:$0xff]
    %v68 = vld [vmem:[#allocation5 + $0x10] sm:$0xff]
    %v69 = vld [vmem:[#allocation5 + $0x18] sm:$0xff]
    %v70 = vld [vmem:[%s2] sm:$0x1]
    %v72 = vlaneseq
    %v73 = vshrl.u32 %v72, 7
    %v74 = vsub.s32 0, %v73
    %v75 = vrot.slane %v70, %v74
    %vm77 = vcmask 261120
    %v79 = vsel %vm77, %v62, 0
    %v82 = vsel %vm77, %v63, 0
    %v85 = vsel %vm77, %v64, 0
    %v88 = vsel %vm77, %v65, 0
    %90 = vmatprep.subr.mxu0 0.0
    %91 = vmatpush1.msra.mxu0 %v66
    %92 = vmatprep.subr.mxu0 0.0
    %93 = vmatpush1.msra.mxu0 %v67
    %94 = vmatprep.subr.mxu0 0.0
    %95 = vmatpush1.msra.mxu0 %v68
    %96 = vmatprep.subr.mxu0 0.0
    %97 = vmatpush1.msra.mxu0 %v69
    %98 = vmatprep.subr.mxu0 0.0
    %99 = vmatpush1.msra.mxu0 0.0
    %100 = vmatprep.subr.mxu0 0.0
    %101 = vmatpush1.msra.mxu0 0.0
    %102 = vmatprep.subr.mxu0 0.0
    %103 = vmatpush1.msra.mxu0 0.0
    %104 = vmatprep.subr.mxu0 0.0
    %105 = vmatpush1.msra.mxu0 0.0
    %106 = vmatprep.subr.mxu0 0.0
    %107 = vmatpush1.msra.mxu0 0.0
    %108 = vmatprep.subr.mxu0 0.0
    %109 = vmatpush1.msra.mxu0 0.0
    %110 = vmatprep.subr.mxu0 0.0
    %111 = vmatpush1.msra.mxu0 0.0
    %112 = vmatprep.subr.mxu0 0.0
    %113 = vmatpush1.msra.mxu0 0.0
    %114 = vmatprep.subr.mxu0 0.0
    %115 = vmatpush1.msra.mxu0 0.0
    %116 = vmatprep.subr.mxu0 0.0
    %117 = vmatpush1.msra.mxu0 0.0
    %118 = vmatprep.subr.mxu0 0.0
    %119 = vmatpush1.msra.mxu0 0.0
    %120 = vmatprep.subr.mxu0 0.0
    %121 = vmatpush1.msra.mxu0 0.0
    %122 = vmatprep.subr.mxu0 0.0
    %123 = vmatpush1.msra.mxu0 0.0
    %124 = vmatprep.subr.mxu0 0.0
    %125 = vmatpush1.msra.mxu0 0.0
    %126 = vmatprep.subr.mxu0 0.0
    %127 = vmatpush1.msra.mxu0 0.0
    %128 = vmatprep.subr.mxu0 0.0
    %129 = vmatpush1.msra.mxu0 0.0
    %130 = vmatprep.subr.mxu0 0.0
    %131 = vmatpush1.msra.mxu0 0.0
    %132 = vmatprep.subr.mxu0 0.0
    %133 = vmatpush1.msra.mxu0 0.0
    %134 = vmatprep.subr.mxu0 0.0
    %135 = vmatpush1.msra.mxu0 0.0
    %136 = vmatprep.subr.mxu0 0.0
    %137 = vmatpush1.msra.mxu0 0.0
    %138 = vmatprep.subr.mxu0 0.0
    %139 = vmatpush1.msra.mxu0 0.0
    %140 = vmatprep.subr.mxu0 0.0
    %141 = vmatpush1.msra.mxu0 0.0
    %142 = vmatprep.subr.mxu0 0.0
    %143 = vmatpush1.msra.mxu0 0.0
    %144 = vmatprep.subr.mxu0 0.0
    %145 = vmatpush1.msra.mxu0 0.0
    %146 = vmatprep.subr.mxu0 0.0
    %147 = vmatpush1.msra.mxu0 0.0
    %148 = vmatprep.subr.mxu0 0.0
    %149 = vmatpush1.msra.mxu0 0.0
    %150 = vmatprep.subr.mxu0 0.0
    %151 = vmatpush1.msra.mxu0 0.0
    %152 = vmatprep.subr.mxu0 0.0
    %153 = vmatpush1.msra.mxu0 0.0
    %154 = vmatprep.mubr.f32.mxu0 0.0
    %155 = vmatmul.mubr.f32.gmra.mrb[0].mxu0 %v79
    %v156 = vpop.f32.mrb[0].mxu0
    %v157 = vadd.f32 %v75, %v156
    %v158 = vpop.f32.mrb[0].mxu0
    %159 = vmatprep.mubr.f32.mxu0 0.0
    %160 = vmatmul.mubr.f32.gmra.mrb[0].mxu0 %v82
    %v161 = vpop.f32.mrb[0].mxu0
    %v162 = vadd.f32 %v75, %v161
    %v163 = vpop.f32.mrb[0].mxu0
    %164 = vmatprep.mubr.f32.mxu0 0.0
    %165 = vmatmul.mubr.f32.gmra.mrb[0].mxu0 %v85
    %v166 = vpop.f32.mrb[0].mxu0
    %v167 = vadd.f32 %v75, %v166
    %v168 = vpop.f32.mrb[0].mxu0
    %169 = vmatprep.mubr.f32.mxu0 0.0
    %170 = vmatmul.mubr.f32.gmra.mrb[0].mxu0 %v88
    %v171 = vpop.f32.mrb[0].mxu0
    %v172 = vadd.f32 %v75, %v171
    %v173 = vpop.f32.mrb[0].mxu0
    %174 = vdwg.mxu0
    %v175 = vmax.f32 %v157, 0.0
    %v176 = vmax.f32 %v162, 0.0
    %v177 = vmax.f32 %v167, 0.0
    %v178 = vmax.f32 %v172, 0.0
    %v179 = vadd.f32 %v62, %v175
    %v180 = vadd.f32 %v63, %v176
    %v181 = vadd.f32 %v64, %v177
    %v182 = vadd.f32 %v65, %v178
    %v183 = vld [vmem:[#allocation7] sm:$0xff]
    %v184 = vld [vmem:[#allocation7 + $0x8] sm:$0xff]
    %v185 = vld [vmem:[#allocation7 + $0x10] sm:$0xff]
    %v186 = vld [vmem:[#allocation7 + $0x18] sm:$0xff]
    %v187 = vld [vmem:[%s4] sm:$0x1]
    %v189 = vlaneseq
    %v190 = vshrl.u32 %v189, 7
    %v191 = vsub.s32 0, %v190
    %v192 = vrot.slane %v187, %v191
    %v195 = vsel %vm77, %v179, 0
    %v198 = vsel %vm77, %v180, 0
    %v201 = vsel %vm77, %v181, 0
    %v204 = vsel %vm77, %v182, 0
    %206 = vmatprep.subr.mxu0 0.0
    %207 = vmatpush1.msra.mxu0 %v183
    %208 = vmatprep.subr.mxu0 0.0
    %209 = vmatpush1.msra.mxu0 %v184
    %210 = vmatprep.subr.mxu0 0.0
    %211 = vmatpush1.msra.mxu0 %v185
    %212 = vmatprep.subr.mxu0 0.0
    %213 = vmatpush1.msra.mxu0 %v186
    %214 = vmatprep.subr.mxu0 0.0
    %215 = vmatpush1.msra.mxu0 0.0
    %216 = vmatprep.subr.mxu0 0.0
    %217 = vmatpush1.msra.mxu0 0.0
    %218 = vmatprep.subr.mxu0 0.0
    %219 = vmatpush1.msra.mxu0 0.0
    %220 = vmatprep.subr.mxu0 0.0
    %221 = vmatpush1.msra.mxu0 0.0
    %222 = vmatprep.subr.mxu0 0.0
    %223 = vmatpush1.msra.mxu0 0.0
    %224 = vmatprep.subr.mxu0 0.0
    %225 = vmatpush1.msra.mxu0 0.0
    %226 = vmatprep.subr.mxu0 0.0
    %227 = vmatpush1.msra.mxu0 0.0
    %228 = vmatprep.subr.mxu0 0.0
    %229 = vmatpush1.msra.mxu0 0.0
    %230 = vmatprep.subr.mxu0 0.0
    %231 = vmatpush1.msra.mxu0 0.0
    %232 = vmatprep.subr.mxu0 0.0
    %233 = vmatpush1.msra.mxu0 0.0
    %234 = vmatprep.subr.mxu0 0.0
    %235 = vmatpush1.msra.mxu0 0.0
    %236 = vmatprep.subr.mxu0 0.0
    %237 = vmatpush1.msra.mxu0 0.0
    %238 = vmatprep.subr.mxu0 0.0
    %239 = vmatpush1.msra.mxu0 0.0
    %240 = vmatprep.subr.mxu0 0.0
    %241 = vmatpush1.msra.mxu0 0.0
    %242 = vmatprep.subr.mxu0 0.0
    %243 = vmatpush1.msra.mxu0 0.0
    %244 = vmatprep.subr.mxu0 0.0
    %245 = vmatpush1.msra.mxu0 0.0
    %246 = vmatprep.subr.mxu0 0.0
    %247 = vmatpush1.msra.mxu0 0.0
    %248 = vmatprep.subr.mxu0 0.0
    %249 = vmatpush1.msra.mxu0 0.0
    %250 = vmatprep.subr.mxu0 0.0
    %251 = vmatpush1.msra.mxu0 0.0
    %252 = vmatprep.subr.mxu0 0.0
    %253 = vmatpush1.msra.mxu0 0.0
    %254 = vmatprep.subr.mxu0 0.0
    %255 = vmatpush1.msra.mxu0 0.0
    %256 = vmatprep.subr.mxu0 0.0
    %257 = vmatpush1.msra.mxu0 0.0
    %258 = vmatprep.subr.mxu0 0.0
    %259 = vmatpush1.msra.mxu0 0.0
    %260 = vmatprep.subr.mxu0 0.0
    %261 = vmatpush1.msra.mxu0 0.0
    %262 = vmatprep.subr.mxu0 0.0
    %263 = vmatpush1.msra.mxu0 0.0
    %264 = vmatprep.subr.mxu0 0.0
    %265 = vmatpush1.msra.mxu0 0.0
    %266 = vmatprep.subr.mxu0 0.0
    %267 = vmatpush1.msra.mxu0 0.0
    %268 = vmatprep.subr.mxu0 0.0
    %269 = vmatpush1.msra.mxu0 0.0
    %270 = vmatprep.mubr.f32.mxu0 0.0
    %271 = vmatmul.mubr.f32.gmra.mrb[0].mxu0 %v195
    %v272 = vpop.f32.mrb[0].mxu0
    %v273 = vadd.f32 %v192, %v272
    %v274 = vpop.f32.mrb[0].mxu0
    %275 = vmatprep.mubr.f32.mxu0 0.0
    %276 = vmatmul.mubr.f32.gmra.mrb[0].mxu0 %v198
    %v277 = vpop.f32.mrb[0].mxu0
    %v278 = vadd.f32 %v192, %v277
    %v279 = vpop.f32.mrb[0].mxu0
    %280 = vmatprep.mubr.f32.mxu0 0.0
    %281 = vmatmul.mubr.f32.gmra.mrb[0].mxu0 %v201
    %v282 = vpop.f32.mrb[0].mxu0
    %v283 = vadd.f32 %v192, %v282
    %v284 = vpop.f32.mrb[0].mxu0
    %285 = vmatprep.mubr.f32.mxu0 0.0
    %286 = vmatmul.mubr.f32.gmra.mrb[0].mxu0 %v204
    %v287 = vpop.f32.mrb[0].mxu0
    %v288 = vadd.f32 %v192, %v287
    %v289 = vpop.f32.mrb[0].mxu0
    %290 = vdwg.mxu0
    %291 = vst [vmem:[#allocation8] sm:$0xff] %v273
    %292 = vst [vmem:[#allocation8 + $0x8] sm:$0xff] %v278
    %293 = vst [vmem:[#allocation8 + $0x10] sm:$0xff] %v283
    %294 = vst [vmem:[#allocation8 + $0x18] sm:$0xff] %v288
    // Predicated region
    $region34: #{tpu_custom_call.1} parent=1 // pred_check
      _
    $region35: #{tpu_custom_call.1} parent=1 // pred_check_branch
      %296 = sbr.rel (0) target = $region37
    $region36: #{tpu_custom_call.1} parent=1 // pred_region
      %s298 = ssub.s32 512, 512
      %299 = vsyncadd [#allocation4], %s298
      %s300 = sshll.u32 [#allocation8], 4
      %s301 = int_to_ptr.vmem [resolvable:$true] %s300
      %306 = dma.vmem_to_hbm [thread:$0]  %s301, 512, %s5, [#allocation4], 128, 128, 8
    $region37: #{tpu_custom_call.1} parent=1 // pred_fallthru
      _
    // Predicated region
    $region38: #{tpu_custom_call.1} parent=1 // pred_check
      _
    $region39: #{tpu_custom_call.1} parent=1 // pred_check_branch
      %308 = sbr.rel (0) target = $region41
    $region40: #{tpu_custom_call.1} parent=1 // pred_region
      %309 = dma.done [#allocation4], 512
    $region41: #{tpu_custom_call.1} parent=1 // pred_fallthru
      _
    %310 = vsyncpa [#allocation3], 1
    %311 = vsyncpa [#allocation6], 1
    %312 = vsyncpa [#allocation4], 1

</llo_original>
